<compile_context>
chip_gen: v6e
topology: v6e:2x2x1
jax: 0.10.0
libtpu: 0.0.40
codegen_flags: <defaults>
</compile_context>

<pallas_src>
import math
import functools

import jax
import jax.numpy as jnp
from jax.experimental import pallas as pl
from jax.experimental.pallas import tpu as pltpu


def _timestamp_kernel(x_ref, sel_ref, coef_ref, off_ref, o_ref, *, d_model, half):
    # x_ref:    (pack, row_block)       f32  -- timestamps, lane-dense (rows on lanes)
    # sel_ref:  (pack, out_width)       f32  -- 0/1 selection: sel[j, l] = (l // d_model == j)
    # coef_ref: (1, out_width)          f32  -- [w | f | f] repeated per packed slot
    # off_ref:  (1, out_width)          f32  -- [b | p | p + pi/2] repeated per packed slot
    # o_ref:    (row_block, out_width)  f32
    #
    # MXU does the timestamp replication: xb[r, l] = x[l // d_model, r].
    # K = pack is tiny and the MXU is otherwise idle; HIGHEST precision keeps it exact.
    xb = jax.lax.dot_general(
        x_ref[...], sel_ref[...],
        dimension_numbers=(((0,), (0,)), ((), ())),
        precision=jax.lax.Precision.HIGHEST,
        preferred_element_type=jnp.float32,
    )                                                   # (row_block, out_width)

    arg = xb * coef_ref[...] + off_ref[...]             # one full-width FMA
    trig = jnp.sin(arg)                                 # one full-width EUP pass

    out_width = arg.shape[-1]
    lane = jax.lax.broadcasted_iota(jnp.int32, (1, out_width), 1)
    is_lin = (lane % d_model) < half                    # linear lanes keep `arg`
    o_ref[...] = jnp.where(is_lin, arg, trig)


def timestamp_encoding(x, weight, bias, frequencies, phase_shifts, *,
                       target_block_bytes=4 * 1024 * 1024):
    """x: (B, S) timestamps. Returns (B, S, d_model) float32."""
    B, S = x.shape
    half = int(weight.size)                      # d_model // 2  (nn.Linear(1, half).weight is (half, 1))
    quarter = int(frequencies.shape[0])          # d_model // 4
    d_model = half + 2 * quarter

    N = B * S
    xf = x.reshape(N).astype(jnp.float32)

    w = weight.reshape(-1).astype(jnp.float32)
    b = bias.reshape(-1).astype(jnp.float32)
    f = frequencies.reshape(-1).astype(jnp.float32)
    p = phase_shifts.reshape(-1).astype(jnp.float32)

    # Lane packing for small d_model -> 128-lane-wide unmasked output stores.
    pack = 128 // d_model if (d_model < 128 and 128 % d_model == 0) else 1
    out_width = pack * d_model

    # Pre-packed lane-dense parameter rows (fold cos into sin via +pi/2).
    coef_seg = jnp.concatenate([w, f, f])                                   # (d_model,)
    off_seg = jnp.concatenate([b, p, p + jnp.float32(math.pi / 2.0)])       # (d_model,)
    coef = jnp.tile(coef_seg, pack)[None, :]                                # (1, out_width)
    off = jnp.tile(off_seg, pack)[None, :]                                  # (1, out_width)
    sel = jnp.repeat(jnp.eye(pack, dtype=jnp.float32), d_model, axis=1)     # (pack, out_width)

    # Row tiling: MiB-scale output blocks amortize the ~0.35us per-step pipeline
    # overhead; keep the grid >= 2 steps when there is enough work so both v7x
    # TensorCores stream (no effect on single-TC v5e/v6e).
    R = -(-N // pack)                                              # packed rows needed
    budget_rows = max(128, ((target_block_bytes // (out_width * 4)) // 128) * 128)
    if R <= 128:
        row_block = max(8, -(-R // 8) * 8)                         # single step, full-extent blocks
        R_pad = row_block
    else:
        half_rows = -(-R // 2)
        row_block = min(budget_rows, -(-half_rows // 128) * 128)   # multiple of 128 (x minor dim)
        R_pad = -(-R // row_block) * row_block

    total = R_pad * pack
    if total != N:
        xf = jnp.pad(xf, (0, total - N))
    # Lane-dense x layout: (pack, R_pad) -> the x DMA minor dim is dense (no 32x lane padding).
    xp = xf.reshape(R_pad, pack).T

    grid = (R_pad // row_block,)

    # Explicit VMEM limit: double-buffered output + x blocks + params, capped for v7x.
    need = 2 * (row_block * out_width * 4 + 8 * row_block * 4) + 4 * 8 * out_width * 4
    vmem_limit = int(min(28 * 1024 * 1024, max(need + (2 << 20), 16 * 1024 * 1024)))

    kernel = functools.partial(_timestamp_kernel, d_model=d_model, half=half)

    out = pl.pallas_call(
        kernel,
        out_shape=jax.ShapeDtypeStruct((R_pad, out_width), jnp.float32),
        grid_spec=pltpu.PrefetchScalarGridSpec(
            num_scalar_prefetch=0,
            grid=grid,
            in_specs=[
                pl.BlockSpec((pack, row_block), lambda i: (0, i)),     # x (lane-dense)
                pl.BlockSpec((pack, out_width), lambda i: (0, 0)),     # sel
                pl.BlockSpec((1, out_width), lambda i: (0, 0)),        # coef
                pl.BlockSpec((1, out_width), lambda i: (0, 0)),        # offset
            ],
            out_specs=pl.BlockSpec((row_block, out_width), lambda i: (i, 0)),
        ),
        compiler_params=pltpu.CompilerParams(
            dimension_semantics=("parallel",),
            vmem_limit_bytes=vmem_limit,
        ),
    )(xp, sel, coef, off)

    return out.reshape(total, d_model)[:N].reshape(B, S, d_model)


def reference(x, weight, bias, frequencies, phase_shifts):
    # Pure-JAX reference mirroring the PyTorch forward exactly.
    xf = x[..., None].astype(jnp.float32)                  # (B, S, 1)
    w = weight.reshape(-1)
    linear_part = xf * w + bias                            # (B, S, half)
    arg = xf * frequencies + phase_shifts                  # (B, S, quarter)
    return jnp.concatenate([linear_part, jnp.sin(arg), jnp.cos(arg)], axis=-1)


if __name__ == "__main__":
    key = jax.random.PRNGKey(0)
    k_x, k_w, k_b, k_f, k_p, k_x2 = jax.random.split(key, 6)

    # Small shapes: batch=2, seq=8, d_model=32
    B, S, d_model = 2, 8, 32
    half, quarter = d_model // 2, d_model // 4

    x = jax.random.uniform(k_x, (B, S), dtype=jnp.float32) * 100.0  # timestamps

    # Parameters matching __init__ shapes: nn.Linear(1, half).weight is (half, 1).
    weight = jax.random.normal(k_w, (half, 1), dtype=jnp.float32) * 0.1
    bias = jax.random.normal(k_b, (half,), dtype=jnp.float32) * 0.1
    frequencies = jax.random.uniform(k_f, (quarter,), dtype=jnp.float32) * 10.0
    phase_shifts = jax.random.uniform(k_p, (quarter,), dtype=jnp.float32) * 2.0 * math.pi

    out = timestamp_encoding(x, weight, bias, frequencies, phase_shifts)
    out = jax.block_until_ready(out)
    ref = reference(x, weight, bias, frequencies, phase_shifts)
    assert out.shape == (B, S, d_model), out.shape
    # sin/cos arguments reach ~1e3 rad: f32 rounding of the FMA argument (and the
    # folded +pi/2 for the cos lanes) allows ~|arg|*eps ~ 1e-4 absolute deviation
    # after range reduction, so compare at 2e-3 abs.
    assert jnp.allclose(out, ref, atol=2e-3, rtol=1e-4), float(jnp.max(jnp.abs(out - ref)))

    # Second shape: ragged row count (N=519, not a multiple of pack=4) and large
    # enough to exercise the multi-step (2-step, megacore-shardable) grid path
    # plus the wrapper padding/slicing.
    B2, S2 = 3, 173
    x2 = jax.random.uniform(k_x2, (B2, S2), dtype=jnp.float32) * 100.0
    out2 = timestamp_encoding(x2, weight, bias, frequencies, phase_shifts)
    out2 = jax.block_until_ready(out2)
    ref2 = reference(x2, weight, bias, frequencies, phase_shifts)
    assert out2.shape == (B2, S2, d_model), out2.shape
    assert jnp.allclose(out2, ref2, atol=2e-3, rtol=1e-4), float(jnp.max(jnp.abs(out2 - ref2)))

    print("KERNEL_OK")
</pallas_src>

<mosaic_0001>
module attributes {stable_mosaic.version = 11 : i64} {
  func.func @_timestamp_kernel(%arg0: i32, %arg1: memref<4x8xf32, #tpu.memory_space<vmem>>, %arg2: memref<4x128xf32, #tpu.memory_space<vmem>>, %arg3: memref<1x128xf32, #tpu.memory_space<vmem>>, %arg4: memref<1x128xf32, #tpu.memory_space<vmem>>, %arg5: memref<8x128xf32, #tpu.memory_space<vmem>>) attributes {dimension_semantics = [#tpu.dimension_semantics<parallel>], iteration_bounds = array<i64: 1>, scalar_prefetch = 0 : i64, scratch_operands = 0 : i64, tpu.core_type = #tpu.core_type<tc>, window_params = [{transform_indices = @transform_0, window_bounds = array<i64: 4, 8>}, {pipeline_mode = #tpu.pipeline_mode<synchronous>, transform_indices = @transform_1, window_bounds = array<i64: 4, 128>}, {pipeline_mode = #tpu.pipeline_mode<synchronous>, transform_indices = @transform_2, window_bounds = array<i64: 1, 128>}, {pipeline_mode = #tpu.pipeline_mode<synchronous>, transform_indices = @transform_3, window_bounds = array<i64: 1, 128>}, {transform_indices = @transform_4, window_bounds = array<i64: 8, 128>}]} {
    %c0 = arith.constant 0 : index
    %c0_0 = arith.constant 0 : index
    %0 = vector.load %arg1[%c0, %c0_0] : memref<4x8xf32, #tpu.memory_space<vmem>>, vector<4x8xf32>
    %c0_1 = arith.constant 0 : index
    %c0_2 = arith.constant 0 : index
    %1 = vector.load %arg2[%c0_1, %c0_2] : memref<4x128xf32, #tpu.memory_space<vmem>>, vector<4x128xf32>
    %cst = arith.constant dense<0.000000e+00> : vector<8x128xf32>
    %2 = tpu.matmul %0, %1, %cst {dimension_numbers = #tpu.dot_dimension_numbers<[0], [0], [1], [1], [0, 1, 1, 1], [], []>, precision = #tpu.contract_precision<fp32>} : vector<4x8xf32>, vector<4x128xf32>, vector<8x128xf32> -> vector<8x128xf32>
    %c0_3 = arith.constant 0 : index
    %c0_4 = arith.constant 0 : index
    %3 = vector.load %arg3[%c0_3, %c0_4] : memref<1x128xf32, #tpu.memory_space<vmem>>, vector<1x128xf32>
    %4 = vector.broadcast %3 : vector<1x128xf32> to vector<8x128xf32>
    %5 = arith.mulf %2, %4 : vector<8x128xf32>
    %c0_5 = arith.constant 0 : index
    %c0_6 = arith.constant 0 : index
    %6 = vector.load %arg4[%c0_5, %c0_6] : memref<1x128xf32, #tpu.memory_space<vmem>>, vector<1x128xf32>
    %7 = vector.broadcast %6 : vector<1x128xf32> to vector<8x128xf32>
    %8 = arith.addf %5, %7 : vector<8x128xf32>
    %9 = math.sin %8 : vector<8x128xf32>
    %10 = tpu.iota {dimensions = array<i32: 1>} : vector<1x128xi32>
    %c32_i32 = arith.constant 32 : i32
    %c0_i32 = arith.constant 0 : i32
    %11 = arith.cmpi eq, %c32_i32, %c0_i32 : i32
    %c1_i32 = arith.constant 1 : i32
    %12 = arith.select %11, %c1_i32, %c32_i32 : i32
    %13 = vector.broadcast %12 : i32 to vector<1x128xi32>
    %14 = arith.remsi %10, %13 : vector<1x128xi32>
    %c0_i32_7 = arith.constant 0 : i32
    %15 = vector.broadcast %c0_i32_7 : i32 to vector<1x128xi32>
    %16 = arith.cmpi ne, %14, %15 : vector<1x128xi32>
    %c0_i32_8 = arith.constant 0 : i32
    %17 = vector.broadcast %c0_i32_8 : i32 to vector<1x128xi32>
    %18 = arith.cmpi slt, %14, %17 : vector<1x128xi32>
    %c0_i32_9 = arith.constant 0 : i32
    %19 = arith.cmpi slt, %12, %c0_i32_9 : i32
    %20 = vector.broadcast %19 : i1 to vector<1x128xi1>
    %21 = vector.broadcast %20 : vector<1x128xi1> to vector<1x128xi1>
    %22 = arith.xori %18, %21 : vector<1x128xi1>
    %23 = arith.andi %22, %16 : vector<1x128xi1>
    %24 = vector.broadcast %12 : i32 to vector<1x128xi32>
    %25 = arith.addi %14, %24 : vector<1x128xi32>
    %26 = arith.select %23, %25, %14 : vector<1x128xi1>, vector<1x128xi32>
    %c16_i32 = arith.constant 16 : i32
    %27 = vector.broadcast %c16_i32 : i32 to vector<1x128xi32>
    %28 = arith.cmpi slt, %26, %27 : vector<1x128xi32>
    %29 = vector.shape_cast %28 : vector<1x128xi1> to vector<1x128xi1>
    %30 = vector.broadcast %29 : vector<1x128xi1> to vector<8x128xi1>
    %31 = arith.select %30, %8, %9 : vector<8x128xi1>, vector<8x128xf32>
    %c0_10 = arith.constant 0 : index
    %c0_11 = arith.constant 0 : index
    %32 = vector.load %arg5[%c0_10, %c0_11] : memref<8x128xf32, #tpu.memory_space<vmem>>, vector<8x128xf32>
    tpu.vector_store %arg5[%c0_10, %c0_11], %31 {strides = array<i32>} : memref<8x128xf32, #tpu.memory_space<vmem>>, vector<8x128xf32>,
    return
  }
  func.func @transform_0(%arg0: i32) -> (i32, i32) {
    %c0_i32 = arith.constant 0 : i32
    %c0_i32_0 = arith.constant 0 : i32
    return %c0_i32, %arg0 : i32, i32
  }
  func.func @transform_1(%arg0: i32) -> (i32, i32) {
    %c0_i32 = arith.constant 0 : i32
    %c0_i32_0 = arith.constant 0 : i32
    %c0_i32_1 = arith.constant 0 : i32
    return %c0_i32, %c0_i32_0 : i32, i32
  }
  func.func @transform_2(%arg0: i32) -> (i32, i32) {
    %c0_i32 = arith.constant 0 : i32
    %c0_i32_0 = arith.constant 0 : i32
    %c0_i32_1 = arith.constant 0 : i32
    return %c0_i32, %c0_i32_0 : i32, i32
  }
  func.func @transform_3(%arg0: i32) -> (i32, i32) {
    %c0_i32 = arith.constant 0 : i32
    %c0_i32_0 = arith.constant 0 : i32
    %c0_i32_1 = arith.constant 0 : i32
    return %c0_i32, %c0_i32_0 : i32, i32
  }
  func.func @transform_4(%arg0: i32) -> (i32, i32) {
    %c0_i32 = arith.constant 0 : i32
    %c0_i32_0 = arith.constant 0 : i32
    return %arg0, %c0_i32 : i32, i32
  }
}

</mosaic_0001>

<llo_original>
// kernel: tpu_custom_call.1
$region0: #{tpu_custom_call.1}
  #allocation0 [shape = 'u32[]', space=smem, size = 0x4, offset = 0x4, fixed_abs, tag = 'smem constant byte address 0x4 - core index']
  #allocation1 [shape = 'u32[144,128]{1,0:T(1,128)}', space=vmem, size = 0x12000, scoped, tag = 'internal scratch']
  %s0 = inlined_call_operand.hbm [shape: f32[4,8], index: 0, kind: input, shape index: {}]
  %s1 = inlined_call_operand.hbm [shape: f32[4,128], index: 1, kind: input, shape index: {}]
  %s2 = inlined_call_operand.vmem [shape: f32[1,128], index: 2, kind: input, shape index: {}]
  %s3 = inlined_call_operand.vmem [shape: f32[1,128], index: 3, kind: input, shape index: {}]
  %s4 = inlined_call_operand.hbm [shape: f32[8,128], index: 4, kind: output, shape index: {}]
  %s5 = sld [smem:[#allocation0]]
  $region34: #{tpu_custom_call.1} parent=0
    _
  %s7 = ssub.s32 1, %s5
  %s8 = scalar_select 0, %s7, %s5
  $region1: #{tpu_custom_call.1} parent=0
    #allocation2 [shape = 'u8[2048]{0}', space=vmem, size = 0x800, scoped, tag = 'input window, operand 0, single buffered']
    #allocation3 [shape = 's32[1]{0}', space=sflag, size = 0x4, scoped, tag = 'scoped memory for tpu_custom_call.1']
    #allocation4 [shape = 's32[1]{0}', space=sflag, size = 0x4, scoped, tag = 'scoped memory for tpu_custom_call.1']
    #allocation5 [shape = 'u8[2048]{0}', space=vmem, size = 0x800, scoped, tag = 'input window, operand 1, single buffered']
    #allocation6 [shape = 's32[1]{0}', space=sflag, size = 0x4, scoped, tag = 'scoped memory for tpu_custom_call.1']
    #allocation7 [shape = 'u8[4096]{0}', space=vmem, size = 0x1000, scoped, tag = 'output window, operand 0, single buffered']
    %9 = vsyncpa [#allocation3], 0
    %10 = vsyncpa [#allocation6], 0
    %11 = vsyncpa [#allocation4], 0
    // Predicated region
    $region2: #{tpu_custom_call.1} parent=1 // pred_check
      _
    $region3: #{tpu_custom_call.1} parent=1 // pred_check_branch
      %13 = sbr.rel (0) target = $region5
    $region4: #{tpu_custom_call.1} parent=1 // pred_region
      %s15 = ssub.s32 64, 64
      %16 = vsyncadd [#allocation3], %s15
      %s18 = sshll.u32 [#allocation2], 4
      %s19 = int_to_ptr.vmem [resolvable:$true] %s18
      %21 = dma.hbm_to_vmem [thread:$0]  %s0, 64, %s19, [#allocation3]
    $region5: #{tpu_custom_call.1} parent=1 // pred_fallthru
      _
    // Predicated region
    $region6: #{tpu_custom_call.1} parent=1 // pred_check
      _
    $region7: #{tpu_custom_call.1} parent=1 // pred_check_branch
      %23 = sbr.rel (0) target = $region9
    $region8: #{tpu_custom_call.1} parent=1 // pred_region
      %s25 = ssub.s32 64, 64
      %26 = vsyncadd [#allocation6], %s25
      %s28 = sshll.u32 [#allocation5], 4
      %s29 = int_to_ptr.vmem [resolvable:$true] %s28
      %31 = dma.hbm_to_vmem [thread:$0]  %s1, 64, %s29, [#allocation6]
    $region9: #{tpu_custom_call.1} parent=1 // pred_fallthru
      _
    // Predicated region
    $region10: #{tpu_custom_call.1} parent=1 // pred_check
      _
    $region11: #{tpu_custom_call.1} parent=1 // pred_check_branch
      %33 = sbr.rel (0) target = $region13
    $region12: #{tpu_custom_call.1} parent=1 // pred_region
      _
    $region13: #{tpu_custom_call.1} parent=1 // pred_fallthru
      _
    // Predicated region
    $region14: #{tpu_custom_call.1} parent=1 // pred_check
      _
    $region15: #{tpu_custom_call.1} parent=1 // pred_check_branch
      %35 = sbr.rel (0) target = $region17
    $region16: #{tpu_custom_call.1} parent=1 // pred_region
      _
    $region17: #{tpu_custom_call.1} parent=1 // pred_fallthru
      _
    // Predicated region
    $region18: #{tpu_custom_call.1} parent=1 // pred_check
      _
    $region19: #{tpu_custom_call.1} parent=1 // pred_check_branch
      %37 = sbr.rel (0) target = $region21
    $region20: #{tpu_custom_call.1} parent=1 // pred_region
      %38 = dma.done [#allocation3], 64
    $region21: #{tpu_custom_call.1} parent=1 // pred_fallthru
      _
    // Predicated region
    $region22: #{tpu_custom_call.1} parent=1 // pred_check
      _
    $region23: #{tpu_custom_call.1} parent=1 // pred_check_branch
      %40 = sbr.rel (0) target = $region25
    $region24: #{tpu_custom_call.1} parent=1 // pred_region
      %41 = dma.done [#allocation6], 64
    $region25: #{tpu_custom_call.1} parent=1 // pred_fallthru
      _
    %v42 = vld [vmem:[#allocation2] sm:$0xf]
    %v43 = vld [vmem:[#allocation5] sm:$0xf]
    %44 = vxpose.xlu0.b32.start [1/16] %v42, 128
    %45 = vxpose.xlu0.b32.cont [2/16] 0.0, 128
    %46 = vxpose.xlu0.b32.cont [3/16] 0.0, 128
    %47 = vxpose.xlu0.b32.cont [4/16] 0.0, 128
    %48 = vxpose.xlu0.b32.cont [5/16] 0.0, 128
    %49 = vxpose.xlu0.b32.cont [6/16] 0.0, 128
    %50 = vxpose.xlu0.b32.cont [7/16] 0.0, 128
    %51 = vxpose.xlu0.b32.cont [8/16] 0.0, 128
    %52 = vxpose.xlu0.b32.cont [9/16] 0.0, 128
    %53 = vxpose.xlu0.b32.cont [10/16] 0.0, 128
    %54 = vxpose.xlu0.b32.cont [11/16] 0.0, 128
    %55 = vxpose.xlu0.b32.cont [12/16] 0.0, 128
    %56 = vxpose.xlu0.b32.cont [13/16] 0.0, 128
    %57 = vxpose.xlu0.b32.cont [14/16] 0.0, 128
    %58 = vxpose.xlu0.b32.cont [15/16] 0.0, 128
    %59 = vxpose.xlu0.b32.end [16/16] 0.0, 128
    %v60 = vpop.trf.xlu0
    %v61 = vpop.trf.xlu0
    %v62 = vpop.trf.xlu0
    %v63 = vpop.trf.xlu0
    %v64 = vpop.trf.xlu0
    %v65 = vpop.trf.xlu0
    %v66 = vpop.trf.xlu0
    %v67 = vpop.trf.xlu0
    %v68 = vpop.trf.xlu0
    %v69 = vpop.trf.xlu0
    %v70 = vpop.trf.xlu0
    %v71 = vpop.trf.xlu0
    %v72 = vpop.trf.xlu0
    %v73 = vpop.trf.xlu0
    %v74 = vpop.trf.xlu0
    %v75 = vpop.trf.xlu0
    %vm76 = vcmask 31744
    %v78 = vsel %vm76, %v60, 0
    %vm80 = vcmask 1043456
    %v82 = vsel %vm80, %v43, 0
    %84 = vmatprep.subr.mxu0 0.0
    %85 = vmatpush1.msra.mxu0 0.0
    %86 = vmatprep.subr.mxu0 0.0
    %87 = vmatpush1.msra.mxu0 0.0
    %88 = vmatprep.subr.mxu0 0.0
    %89 = vmatpush1.msra.mxu0 0.0
    %90 = vmatprep.subr.mxu0 0.0
    %91 = vmatpush1.msra.mxu0 0.0
    %92 = vmatprep.subr.mxu0 0.0
    %93 = vmatpush1.msra.mxu0 0.0
    %94 = vmatprep.subr.mxu0 0.0
    %95 = vmatpush1.msra.mxu0 0.0
    %96 = vmatprep.subr.mxu0 0.0
    %97 = vmatpush1.msra.mxu0 0.0
    %98 = vmatprep.subr.mxu0 0.0
    %99 = vmatpush1.msra.mxu0 0.0
    %100 = vmatprep.subr.mxu0 0.0
    %101 = vmatpush1.msra.mxu0 0.0
    %102 = vmatprep.subr.mxu0 0.0
    %103 = vmatpush1.msra.mxu0 0.0
    %104 = vmatprep.subr.mxu0 0.0
    %105 = vmatpush1.msra.mxu0 0.0
    %106 = vmatprep.subr.mxu0 0.0
    %107 = vmatpush1.msra.mxu0 0.0
    %108 = vmatprep.subr.mxu0 0.0
    %109 = vmatpush1.msra.mxu0 0.0
    %110 = vmatprep.subr.mxu0 0.0
    %111 = vmatpush1.msra.mxu0 0.0
    %112 = vmatprep.subr.mxu0 0.0
    %113 = vmatpush1.msra.mxu0 0.0
    %114 = vmatprep.subr.mxu0 0.0
    %v115 = vand.u32 %v82, 4294901760
    %116 = vmatpush1.msra.mxu0 %v115
    %117 = vmatprep.subr.mxu0 0.0
    %118 = vmatpush2.msra.mxu0 0.0
    %119 = vmatprep.subr.mxu0 0.0
    %120 = vmatpush2.msra.mxu0 0.0
    %121 = vmatprep.subr.mxu0 0.0
    %122 = vmatpush2.msra.mxu0 0.0
    %123 = vmatprep.subr.mxu0 0.0
    %124 = vmatpush2.msra.mxu0 0.0
    %125 = vmatprep.subr.mxu0 0.0
    %126 = vmatpush2.msra.mxu0 0.0
    %127 = vmatprep.subr.mxu0 0.0
    %128 = vmatpush2.msra.mxu0 0.0
    %129 = vmatprep.subr.mxu0 0.0
    %130 = vmatpush2.msra.mxu0 0.0
    %131 = vmatprep.subr.mxu0 0.0
    %132 = vmatpush2.msra.mxu0 0.0
    %133 = vmatprep.subr.mxu0 0.0
    %134 = vmatpush2.msra.mxu0 0.0
    %135 = vmatprep.subr.mxu0 0.0
    %136 = vmatpush2.msra.mxu0 0.0
    %137 = vmatprep.subr.mxu0 0.0
    %138 = vmatpush2.msra.mxu0 0.0
    %139 = vmatprep.subr.mxu0 0.0
    %140 = vmatpush2.msra.mxu0 0.0
    %141 = vmatprep.subr.mxu0 0.0
    %142 = vmatpush2.msra.mxu0 0.0
    %143 = vmatprep.subr.mxu0 0.0
    %144 = vmatpush2.msra.mxu0 0.0
    %145 = vmatprep.subr.mxu0 0.0
    %146 = vmatpush2.msra.mxu0 0.0
    %147 = vmatprep.subr.mxu0 0.0
    %148 = vmatpush2.msra.mxu0 0.0
    %149 = vmatprep.mubr.f32.mxu0 0.0
    %v150 = vand.u32 %v78, 4294901760
    %v151 = vsub.f32 %v78, %v150
    %v152 = vand.u32 %v151, 4294901760
    %v153 = vsub.f32 %v151, %v152
    %v154 = vand.u32 %v153, 4294901760
    %155 = vmatmul.mubr.f32.gmra.mxu0 %v154
    %v156 = vpop.f32.mrf.mxu0
    %v157 = vadd.f32 0.0, %v156
    %v158 = vpop.f32.mrf.mxu0
    %159 = vdwg.mxu0
    %160 = vmatprep.subr.mxu0 0.0
    %161 = vmatpush1.msra.mxu0 0.0
    %162 = vmatprep.subr.mxu0 0.0
    %163 = vmatpush1.msra.mxu0 0.0
    %164 = vmatprep.subr.mxu0 0.0
    %165 = vmatpush1.msra.mxu0 0.0
    %166 = vmatprep.subr.mxu0 0.0
    %167 = vmatpush1.msra.mxu0 0.0
    %168 = vmatprep.subr.mxu0 0.0
    %169 = vmatpush1.msra.mxu0 0.0
    %170 = vmatprep.subr.mxu0 0.0
    %171 = vmatpush1.msra.mxu0 0.0
    %172 = vmatprep.subr.mxu0 0.0
    %173 = vmatpush1.msra.mxu0 0.0
    %174 = vmatprep.subr.mxu0 0.0
    %175 = vmatpush1.msra.mxu0 0.0
    %176 = vmatprep.subr.mxu0 0.0
    %177 = vmatpush1.msra.mxu0 0.0
    %178 = vmatprep.subr.mxu0 0.0
    %179 = vmatpush1.msra.mxu0 0.0
    %180 = vmatprep.subr.mxu0 0.0
    %181 = vmatpush1.msra.mxu0 0.0
    %182 = vmatprep.subr.mxu0 0.0
    %183 = vmatpush1.msra.mxu0 0.0
    %184 = vmatprep.subr.mxu0 0.0
    %185 = vmatpush1.msra.mxu0 0.0
    %186 = vmatprep.subr.mxu0 0.0
    %187 = vmatpush1.msra.mxu0 0.0
    %188 = vmatprep.subr.mxu0 0.0
    %189 = vmatpush1.msra.mxu0 0.0
    %190 = vmatprep.subr.mxu0 0.0
    %v191 = vand.u32 %v82, 4294901760
    %v192 = vsub.f32 %v82, %v191
    %v193 = vand.u32 %v192, 4294901760
    %v194 = vsub.f32 %v192, %v193
    %v195 = vand.u32 %v194, 4294901760
    %196 = vmatpush1.msra.mxu0 %v195
    %197 = vmatprep.subr.mxu0 0.0
    %198 = vmatpush2.msra.mxu0 0.0
    %199 = vmatprep.subr.mxu0 0.0
    %200 = vmatpush2.msra.mxu0 0.0
    %201 = vmatprep.subr.mxu0 0.0
    %202 = vmatpush2.msra.mxu0 0.0
    %203 = vmatprep.subr.mxu0 0.0
    %204 = vmatpush2.msra.mxu0 0.0
    %205 = vmatprep.subr.mxu0 0.0
    %206 = vmatpush2.msra.mxu0 0.0
    %207 = vmatprep.subr.mxu0 0.0
    %208 = vmatpush2.msra.mxu0 0.0
    %209 = vmatprep.subr.mxu0 0.0
    %210 = vmatpush2.msra.mxu0 0.0
    %211 = vmatprep.subr.mxu0 0.0
    %212 = vmatpush2.msra.mxu0 0.0
    %213 = vmatprep.subr.mxu0 0.0
    %214 = vmatpush2.msra.mxu0 0.0
    %215 = vmatprep.subr.mxu0 0.0
    %216 = vmatpush2.msra.mxu0 0.0
    %217 = vmatprep.subr.mxu0 0.0
    %218 = vmatpush2.msra.mxu0 0.0
    %219 = vmatprep.subr.mxu0 0.0
    %220 = vmatpush2.msra.mxu0 0.0
    %221 = vmatprep.subr.mxu0 0.0
    %222 = vmatpush2.msra.mxu0 0.0
    %223 = vmatprep.subr.mxu0 0.0
    %224 = vmatpush2.msra.mxu0 0.0
    %225 = vmatprep.subr.mxu0 0.0
    %226 = vmatpush2.msra.mxu0 0.0
    %227 = vmatprep.subr.mxu0 0.0
    %228 = vmatpush2.msra.mxu0 0.0
    %229 = vmatprep.mubr.f32.mxu0 0.0
    %v230 = vand.u32 %v78, 4294901760
    %231 = vmatmul.mubr.f32.gmra.mxu0 %v230
    %v232 = vpop.f32.mrf.mxu0
    %v233 = vadd.f32 %v157, %v232
    %v234 = vpop.f32.mrf.mxu0
    %235 = vdwg.mxu0
    %236 = vmatprep.subr.mxu0 0.0
    %237 = vmatpush1.msra.mxu0 0.0
    %238 = vmatprep.subr.mxu0 0.0
    %239 = vmatpush1.msra.mxu0 0.0
    %240 = vmatprep.subr.mxu0 0.0
    %241 = vmatpush1.msra.mxu0 0.0
    %242 = vmatprep.subr.mxu0 0.0
    %243 = vmatpush1.msra.mxu0 0.0
    %244 = vmatprep.subr.mxu0 0.0
    %245 = vmatpush1.msra.mxu0 0.0
    %246 = vmatprep.subr.mxu0 0.0
    %247 = vmatpush1.msra.mxu0 0.0
    %248 = vmatprep.subr.mxu0 0.0
    %249 = vmatpush1.msra.mxu0 0.0
    %250 = vmatprep.subr.mxu0 0.0
    %251 = vmatpush1.msra.mxu0 0.0
    %252 = vmatprep.subr.mxu0 0.0
    %253 = vmatpush1.msra.mxu0 0.0
    %254 = vmatprep.subr.mxu0 0.0
    %255 = vmatpush1.msra.mxu0 0.0
    %256 = vmatprep.subr.mxu0 0.0
    %257 = vmatpush1.msra.mxu0 0.0
    %258 = vmatprep.subr.mxu0 0.0
    %259 = vmatpush1.msra.mxu0 0.0
    %260 = vmatprep.subr.mxu0 0.0
    %261 = vmatpush1.msra.mxu0 0.0
    %262 = vmatprep.subr.mxu0 0.0
    %263 = vmatpush1.msra.mxu0 0.0
    %264 = vmatprep.subr.mxu0 0.0
    %265 = vmatpush1.msra.mxu0 0.0
    %266 = vmatprep.subr.mxu0 0.0
    %v267 = vand.u32 %v82, 4294901760
    %v268 = vsub.f32 %v82, %v267
    %269 = vmatpush1.msra.mxu0 %v268
    %270 = vmatprep.subr.mxu0 0.0
    %271 = vmatpush2.msra.mxu0 0.0
    %272 = vmatprep.subr.mxu0 0.0
    %273 = vmatpush2.msra.mxu0 0.0
    %274 = vmatprep.subr.mxu0 0.0
    %275 = vmatpush2.msra.mxu0 0.0
    %276 = vmatprep.subr.mxu0 0.0
    %277 = vmatpush2.msra.mxu0 0.0
    %278 = vmatprep.subr.mxu0 0.0
    %279 = vmatpush2.msra.mxu0 0.0
    %280 = vmatprep.subr.mxu0 0.0
    %281 = vmatpush2.msra.mxu0 0.0
    %282 = vmatprep.subr.mxu0 0.0
    %283 = vmatpush2.msra.mxu0 0.0
    %284 = vmatprep.subr.mxu0 0.0
    %285 = vmatpush2.msra.mxu0 0.0
    %286 = vmatprep.subr.mxu0 0.0
    %287 = vmatpush2.msra.mxu0 0.0
    %288 = vmatprep.subr.mxu0 0.0
    %289 = vmatpush2.msra.mxu0 0.0
    %290 = vmatprep.subr.mxu0 0.0
    %291 = vmatpush2.msra.mxu0 0.0
    %292 = vmatprep.subr.mxu0 0.0
    %293 = vmatpush2.msra.mxu0 0.0
    %294 = vmatprep.subr.mxu0 0.0
    %295 = vmatpush2.msra.mxu0 0.0
    %296 = vmatprep.subr.mxu0 0.0
    %297 = vmatpush2.msra.mxu0 0.0
    %298 = vmatprep.subr.mxu0 0.0
    %299 = vmatpush2.msra.mxu0 0.0
    %300 = vmatprep.subr.mxu0 0.0
    %301 = vmatpush2.msra.mxu0 0.0
    %302 = vmatprep.mubr.f32.mxu0 0.0
    %v303 = vand.u32 %v78, 4294901760
    %v304 = vsub.f32 %v78, %v303
    %305 = vmatmul.mubr.f32.gmra.mxu0 %v304
    %v306 = vpop.f32.mrf.mxu0
    %v307 = vadd.f32 %v233, %v306
    %v308 = vpop.f32.mrf.mxu0
    %309 = vdwg.mxu0
    %310 = vmatprep.subr.mxu0 0.0
    %311 = vmatpush1.msra.mxu0 0.0
    %312 = vmatprep.subr.mxu0 0.0
    %313 = vmatpush1.msra.mxu0 0.0
    %314 = vmatprep.subr.mxu0 0.0
    %315 = vmatpush1.msra.mxu0 0.0
    %316 = vmatprep.subr.mxu0 0.0
    %317 = vmatpush1.msra.mxu0 0.0
    %318 = vmatprep.subr.mxu0 0.0
    %319 = vmatpush1.msra.mxu0 0.0
    %320 = vmatprep.subr.mxu0 0.0
    %321 = vmatpush1.msra.mxu0 0.0
    %322 = vmatprep.subr.mxu0 0.0
    %323 = vmatpush1.msra.mxu0 0.0
    %324 = vmatprep.subr.mxu0 0.0
    %325 = vmatpush1.msra.mxu0 0.0
    %326 = vmatprep.subr.mxu0 0.0
    %327 = vmatpush1.msra.mxu0 0.0
    %328 = vmatprep.subr.mxu0 0.0
    %329 = vmatpush1.msra.mxu0 0.0
    %330 = vmatprep.subr.mxu0 0.0
    %331 = vmatpush1.msra.mxu0 0.0
    %332 = vmatprep.subr.mxu0 0.0
    %333 = vmatpush1.msra.mxu0 0.0
    %334 = vmatprep.subr.mxu0 0.0
    %335 = vmatpush1.msra.mxu0 0.0
    %336 = vmatprep.subr.mxu0 0.0
    %337 = vmatpush1.msra.mxu0 0.0
    %338 = vmatprep.subr.mxu0 0.0
    %339 = vmatpush1.msra.mxu0 0.0
    %340 = vmatprep.subr.mxu0 0.0
    %v341 = vand.u32 %v82, 4294901760
    %342 = vmatpush1.msra.mxu0 %v341
    %343 = vmatprep.subr.mxu0 0.0
    %344 = vmatpush2.msra.mxu0 0.0
    %345 = vmatprep.subr.mxu0 0.0
    %346 = vmatpush2.msra.mxu0 0.0
    %347 = vmatprep.subr.mxu0 0.0
    %348 = vmatpush2.msra.mxu0 0.0
    %349 = vmatprep.subr.mxu0 0.0
    %350 = vmatpush2.msra.mxu0 0.0
    %351 = vmatprep.subr.mxu0 0.0
    %352 = vmatpush2.msra.mxu0 0.0
    %353 = vmatprep.subr.mxu0 0.0
    %354 = vmatpush2.msra.mxu0 0.0
    %355 = vmatprep.subr.mxu0 0.0
    %356 = vmatpush2.msra.mxu0 0.0
    %357 = vmatprep.subr.mxu0 0.0
    %358 = vmatpush2.msra.mxu0 0.0
    %359 = vmatprep.subr.mxu0 0.0
    %360 = vmatpush2.msra.mxu0 0.0
    %361 = vmatprep.subr.mxu0 0.0
    %362 = vmatpush2.msra.mxu0 0.0
    %363 = vmatprep.subr.mxu0 0.0
    %364 = vmatpush2.msra.mxu0 0.0
    %365 = vmatprep.subr.mxu0 0.0
    %366 = vmatpush2.msra.mxu0 0.0
    %367 = vmatprep.subr.mxu0 0.0
    %368 = vmatpush2.msra.mxu0 0.0
    %369 = vmatprep.subr.mxu0 0.0
    %370 = vmatpush2.msra.mxu0 0.0
    %371 = vmatprep.subr.mxu0 0.0
    %372 = vmatpush2.msra.mxu0 0.0
    %373 = vmatprep.subr.mxu0 0.0
    %374 = vmatpush2.msra.mxu0 0.0
    %375 = vmatprep.mubr.f32.mxu0 0.0
    %v376 = vand.u32 %v78, 4294901760
    %v377 = vsub.f32 %v78, %v376
    %v378 = vand.u32 %v377, 4294901760
    %379 = vmatmul.mubr.f32.gmra.mxu0 %v378
    %v380 = vpop.f32.mrf.mxu0
    %v381 = vadd.f32 %v307, %v380
    %v382 = vpop.f32.mrf.mxu0
    %383 = vdwg.mxu0
    %384 = vmatprep.subr.mxu0 0.0
    %385 = vmatpush1.msra.mxu0 0.0
    %386 = vmatprep.subr.mxu0 0.0
    %387 = vmatpush1.msra.mxu0 0.0
    %388 = vmatprep.subr.mxu0 0.0
    %389 = vmatpush1.msra.mxu0 0.0
    %390 = vmatprep.subr.mxu0 0.0
    %391 = vmatpush1.msra.mxu0 0.0
    %392 = vmatprep.subr.mxu0 0.0
    %393 = vmatpush1.msra.mxu0 0.0
    %394 = vmatprep.subr.mxu0 0.0
    %395 = vmatpush1.msra.mxu0 0.0
    %396 = vmatprep.subr.mxu0 0.0
    %397 = vmatpush1.msra.mxu0 0.0
    %398 = vmatprep.subr.mxu0 0.0
    %399 = vmatpush1.msra.mxu0 0.0
    %400 = vmatprep.subr.mxu0 0.0
    %401 = vmatpush1.msra.mxu0 0.0
    %402 = vmatprep.subr.mxu0 0.0
    %403 = vmatpush1.msra.mxu0 0.0
    %404 = vmatprep.subr.mxu0 0.0
    %405 = vmatpush1.msra.mxu0 0.0
    %406 = vmatprep.subr.mxu0 0.0
    %407 = vmatpush1.msra.mxu0 0.0
    %408 = vmatprep.subr.mxu0 0.0
    %409 = vmatpush1.msra.mxu0 0.0
    %410 = vmatprep.subr.mxu0 0.0
    %411 = vmatpush1.msra.mxu0 0.0
    %412 = vmatprep.subr.mxu0 0.0
    %413 = vmatpush1.msra.mxu0 0.0
    %414 = vmatprep.subr.mxu0 0.0
    %v415 = vand.u32 %v82, 4294901760
    %v416 = vsub.f32 %v82, %v415
    %v417 = vand.u32 %v416, 4294901760
    %418 = vmatpush1.msra.mxu0 %v417
    %419 = vmatprep.subr.mxu0 0.0
    %420 = vmatpush2.msra.mxu0 0.0
    %421 = vmatprep.subr.mxu0 0.0
    %422 = vmatpush2.msra.mxu0 0.0
    %423 = vmatprep.subr.mxu0 0.0
    %424 = vmatpush2.msra.mxu0 0.0
    %425 = vmatprep.subr.mxu0 0.0
    %426 = vmatpush2.msra.mxu0 0.0
    %427 = vmatprep.subr.mxu0 0.0
    %428 = vmatpush2.msra.mxu0 0.0
    %429 = vmatprep.subr.mxu0 0.0
    %430 = vmatpush2.msra.mxu0 0.0
    %431 = vmatprep.subr.mxu0 0.0
    %432 = vmatpush2.msra.mxu0 0.0
    %433 = vmatprep.subr.mxu0 0.0
    %434 = vmatpush2.msra.mxu0 0.0
    %435 = vmatprep.subr.mxu0 0.0
    %436 = vmatpush2.msra.mxu0 0.0
    %437 = vmatprep.subr.mxu0 0.0
    %438 = vmatpush2.msra.mxu0 0.0
    %439 = vmatprep.subr.mxu0 0.0
    %440 = vmatpush2.msra.mxu0 0.0
    %441 = vmatprep.subr.mxu0 0.0
    %442 = vmatpush2.msra.mxu0 0.0
    %443 = vmatprep.subr.mxu0 0.0
    %444 = vmatpush2.msra.mxu0 0.0
    %445 = vmatprep.subr.mxu0 0.0
    %446 = vmatpush2.msra.mxu0 0.0
    %447 = vmatprep.subr.mxu0 0.0
    %448 = vmatpush2.msra.mxu0 0.0
    %449 = vmatprep.subr.mxu0 0.0
    %450 = vmatpush2.msra.mxu0 0.0
    %451 = vmatprep.mubr.f32.mxu0 0.0
    %v452 = vand.u32 %v78, 4294901760
    %453 = vmatmul.mubr.f32.gmra.mxu0 %v452
    %v454 = vpop.f32.mrf.mxu0
    %v455 = vadd.f32 %v381, %v454
    %v456 = vpop.f32.mrf.mxu0
    %457 = vdwg.mxu0
    %458 = vmatprep.subr.mxu0 0.0
    %459 = vmatpush1.msra.mxu0 0.0
    %460 = vmatprep.subr.mxu0 0.0
    %461 = vmatpush1.msra.mxu0 0.0
    %462 = vmatprep.subr.mxu0 0.0
    %463 = vmatpush1.msra.mxu0 0.0
    %464 = vmatprep.subr.mxu0 0.0
    %465 = vmatpush1.msra.mxu0 0.0
    %466 = vmatprep.subr.mxu0 0.0
    %467 = vmatpush1.msra.mxu0 0.0
    %468 = vmatprep.subr.mxu0 0.0
    %469 = vmatpush1.msra.mxu0 0.0
    %470 = vmatprep.subr.mxu0 0.0
    %471 = vmatpush1.msra.mxu0 0.0
    %472 = vmatprep.subr.mxu0 0.0
    %473 = vmatpush1.msra.mxu0 0.0
    %474 = vmatprep.subr.mxu0 0.0
    %475 = vmatpush1.msra.mxu0 0.0
    %476 = vmatprep.subr.mxu0 0.0
    %477 = vmatpush1.msra.mxu0 0.0
    %478 = vmatprep.subr.mxu0 0.0
    %479 = vmatpush1.msra.mxu0 0.0
    %480 = vmatprep.subr.mxu0 0.0
    %481 = vmatpush1.msra.mxu0 0.0
    %482 = vmatprep.subr.mxu0 0.0
    %483 = vmatpush1.msra.mxu0 0.0
    %484 = vmatprep.subr.mxu0 0.0
    %485 = vmatpush1.msra.mxu0 0.0
    %486 = vmatprep.subr.mxu0 0.0
    %487 = vmatpush1.msra.mxu0 0.0
    %488 = vmatprep.subr.mxu0 0.0
    %v489 = vand.u32 %v82, 4294901760
    %490 = vmatpush1.msra.mxu0 %v489
    %491 = vmatprep.subr.mxu0 0.0
    %492 = vmatpush2.msra.mxu0 0.0
    %493 = vmatprep.subr.mxu0 0.0
    %494 = vmatpush2.msra.mxu0 0.0
    %495 = vmatprep.subr.mxu0 0.0
    %496 = vmatpush2.msra.mxu0 0.0
    %497 = vmatprep.subr.mxu0 0.0
    %498 = vmatpush2.msra.mxu0 0.0
    %499 = vmatprep.subr.mxu0 0.0
    %500 = vmatpush2.msra.mxu0 0.0
    %501 = vmatprep.subr.mxu0 0.0
    %502 = vmatpush2.msra.mxu0 0.0
    %503 = vmatprep.subr.mxu0 0.0
    %504 = vmatpush2.msra.mxu0 0.0
    %505 = vmatprep.subr.mxu0 0.0
    %506 = vmatpush2.msra.mxu0 0.0
    %507 = vmatprep.subr.mxu0 0.0
    %508 = vmatpush2.msra.mxu0 0.0
    %509 = vmatprep.subr.mxu0 0.0
    %510 = vmatpush2.msra.mxu0 0.0
    %511 = vmatprep.subr.mxu0 0.0
    %512 = vmatpush2.msra.mxu0 0.0
    %513 = vmatprep.subr.mxu0 0.0
    %514 = vmatpush2.msra.mxu0 0.0
    %515 = vmatprep.subr.mxu0 0.0
    %516 = vmatpush2.msra.mxu0 0.0
    %517 = vmatprep.subr.mxu0 0.0
    %518 = vmatpush2.msra.mxu0 0.0
    %519 = vmatprep.subr.mxu0 0.0
    %520 = vmatpush2.msra.mxu0 0.0
    %521 = vmatprep.subr.mxu0 0.0
    %522 = vmatpush2.msra.mxu0 0.0
    %523 = vmatprep.mubr.f32.mxu0 0.0
    %v524 = vand.u32 %v78, 4294901760
    %525 = vmatmul.mubr.f32.gmra.mxu0 %v524
    %v526 = vpop.f32.mrf.mxu0
    %v527 = vadd.f32 %v455, %v526
    %v528 = vpop.f32.mrf.mxu0
    %529 = vdwg.mxu0
    %v530 = vld [vmem:[%s2] sm:$0x1]
    %v532 = vlaneseq
    %v533 = vshrl.u32 %v532, 7
    %v534 = vsub.s32 0, %v533
    %v535 = vrot.slane %v530, %v534
    %v537 = vmul.f32 %v527, %v535
    %v538 = vld [vmem:[%s3] sm:$0x1]
    %v540 = vlaneseq
    %v541 = vshrl.u32 %v540, 7
    %v542 = vsub.s32 0, %v541
    %v543 = vrot.slane %v538, %v542
    %v545 = vadd.f32 %v537, %v543
    %v546 = vand.u32 2147483647, %v545
    %vm547 = vcmp.le.f32.partialorder %v546, 0.7853982
    %vm548 = vcmp.lt.s32.totalorder %v545, 0
    %v549 = vand.u32 %v545, 2139095040
    %v550 = vshrl.u32 %v549, 23
    %v551 = vsub.s32 %v550, 127
    %v552 = vand.u32 2147483647, %v545
    %v553 = vand.u32 %v552, 8388607
    %v554 = vor.u32 %v553, 8388608
    %v555 = vsub.s32 0, %v554
    %v556 = vadd.s32 %v551, 1
    %vm557 = vcmp.gt.s32.totalorder %v556, 0
    %v558 = vsel %vm557, %v556, 0
    %v559 = vshrl.u32 %v558, 5
    %v560 = vand.u32 %v558, 31
    %v561 = vsub.s32 32, %v560
    %v562 = vshrl.u32 683565275, %v561
    %v563 = vshll.u32 683565275, %v560
    %v564 = vshrl.u32 2475754826, %v561
    %v565 = vor.u32 %v563, %v564
    %v566 = vshll.u32 2475754826, %v560
    %v567 = vshrl.u32 2131351028, %v561
    %v568 = vor.u32 %v566, %v567
    %v569 = vshll.u32 2131351028, %v560
    %v570 = vshrl.u32 2102212464, %v561
    %v571 = vor.u32 %v569, %v570
    %v572 = vshll.u32 2102212464, %v560
    %v573 = vshrl.u32 920167782, %v561
    %v574 = vor.u32 %v572, %v573
    %v575 = vshll.u32 920167782, %v560
    %v576 = vshrl.u32 1326507024, %v561
    %v577 = vor.u32 %v575, %v576
    %vm578 = vcmp.lt.s32.totalorder %v559, 1
    %vm579 = vcmp.lt.s32.totalorder %v559, 2
    %vm580 = vcmp.lt.s32.totalorder %v559, 3
    %vm581 = vcmp.lt.s32.totalorder %v559, 4
    %v582 = vsel %vm578, %v562, %v565
    %v583 = vsel %vm581, %v571, 2102212464
    %v584 = vsel %vm580, %v568, %v583
    %v585 = vsel %vm579, %v582, %v584
    %v586 = vsel %vm578, %v565, %v568
    %v587 = vsel %vm581, %v574, 920167782
    %v588 = vsel %vm580, %v571, %v587
    %v589 = vsel %vm579, %v586, %v588
    %v590 = vsel %vm578, %v568, %v571
    %v591 = vsel %vm581, %v577, 1326507024
    %v592 = vsel %vm580, %v574, %v591
    %v593 = vsel %vm579, %v590, %v592
    %v594 = vshll.u32 %v554, 8
    %v595 = vmul.u32.u64.compose %v594, %v593
    %v596 = vextract.low.u32 %v595
    %v597 = vextract.high.u32 %v595
    %v598 = vmul.u32.u64.compose %v594, %v589
    %v599 = vextract.low.u32 %v598
    %v600 = vextract.high.u32 %v598
    %v601 = vmul.u32 %v594, %v585
    %v602 = vadd.s32 %v597, %v599
    %vm603 = vc.u32 %v597, %v599
    %v604 = vadd.s32 %v600, 1
    %v605 = vsel %vm603, %v604, %v600
    %v606 = vadd.s32 %v601, %v605
    %v607 = vadd.s32 %v606, 536870912
    %v608 = vshrl.u32 %v607, 30
    %v609 = vshll.u32 %v608, 30
    %v610 = vsub.s32 %v606, %v609
    %vm611 = vcmp.lt.s32.totalorder %v610, 0
    %v612 = vsub.s32 0, %v610
    %v613 = vsel %vm611, %v612, %v610
    %v614 = vclz %v613
    %v615 = vsub.s32 %v614, 2
    %vm616 = vcmp.gt.s32.totalorder 0, %v615
    %v617 = vsel %vm616, 0, %v615
    %v618 = vsub.s32 32, %v617
    %v619 = vshll.u32 %v610, %v617
    %v620 = vshrl.u32 %v602, %v618
    %v621 = vor.u32 %v619, %v620
    %v622 = vsub.s32 4294967266, %v617
    %v623 = vadd.s32 %v622, 127
    %v624 = vshll.u32 %v623, 23
    %v625 = vor.u32 4788187, %v624
    %v626 = vand.u32 2147483647, %v625
    %v628 = vcvt.s32.f32 %v621
    %v629 = vmul.f32 %v628, %v626
    %v630 = vxor.u32 %v629, 2147483648
    %v631 = vsel %vm548, %v630, %v629
    %v632 = vsub.s32 4, %v608
    %v633 = vsel %vm548, %v632, %v608
    %v634 = vsel %vm547, %v545, %v631
    %v635 = vsel %vm547, 0, %v633
    %v636 = vcosq.f32.pop %v634
    %v637 = vsinq.f32.pop %v634
    %vm638 = vweird.f32 %v545
    %v639 = vadd.s32 %v635, 3
    %v640 = vand.u32 %v639, 3
    %vm641 = vcmp.lt.s32.totalorder %v640, 2
    %vm642 = vcmp.eq.s32.totalorder %v640, 0
    %v643 = vxor.u32 %v637, 2147483648
    %v644 = vsel %vm642, %v636, %v643
    %vm645 = vcmp.eq.s32.totalorder %v640, 2
    %v646 = vxor.u32 %v636, 2147483648
    %v647 = vsel %vm645, %v646, %v637
    %v648 = vsel %vm641, %v644, %v647
    %v649 = vsel %vm638, nan, %v648
    %v650 = vlaneseq
    %v651 = vand.u32 %v650, 127
    %vm652 = vcmp.lt.s32.totalorder %v651, 0
    %v653 = vsub.s32 0, %v651
    %v654 = vsel %vm652, %v653, %v651
    %v655 = vshrl.u32 %v654, 5
    %v656 = vand.u32 %v654, 31
    %v657 = vsub.s32 0, %v656
    %v658 = vsel %vm652, %v657, %v656
    %vm659 = vcmp.ne.s32.totalorder %v658, 0
    %vm660 = vcmp.lt.s32.totalorder %v658, 0
    %vm661 = vmand %vm660, %vm659
    %v662 = vadd.s32 %v658, 32
    %v663 = vsel %vm661, %v662, %v658
    %vm664 = vcmp.lt.s32.totalorder %v663, 16
    %v665 = vsel %vm664, 1, 0
    %vm666 = vcmp.eq.s32.totalorder %v665, 1
    %v667 = vsel %vm666, %v545, %v649
    %668 = vst [vmem:[#allocation7] sm:$0xff] %v667
    // Predicated region
    $region26: #{tpu_custom_call.1} parent=1 // pred_check
      _
    $region27: #{tpu_custom_call.1} parent=1 // pred_check_branch
      %670 = sbr.rel (0) target = $region29
    $region28: #{tpu_custom_call.1} parent=1 // pred_region
      %s672 = ssub.s32 128, 128
      %673 = vsyncadd [#allocation4], %s672
      %s675 = sshll.u32 [#allocation7], 4
      %s676 = int_to_ptr.vmem [resolvable:$true] %s675
      %678 = dma.vmem_to_hbm [thread:$0]  %s676, 128, %s4, [#allocation4]
    $region29: #{tpu_custom_call.1} parent=1 // pred_fallthru
      _
    // Predicated region
    $region30: #{tpu_custom_call.1} parent=1 // pred_check
      _
    $region31: #{tpu_custom_call.1} parent=1 // pred_check_branch
      %680 = sbr.rel (0) target = $region33
    $region32: #{tpu_custom_call.1} parent=1 // pred_region
      %681 = dma.done [#allocation4], 128
    $region33: #{tpu_custom_call.1} parent=1 // pred_fallthru
      _
    %682 = vsyncpa [#allocation3], 1
    %683 = vsyncpa [#allocation6], 1
    %684 = vsyncpa [#allocation4], 1

</llo_original>
